<compile_context>
chip_gen: v7x
topology: tpu7x:2x2x1
jax: 0.10.0
libtpu: 0.0.40
codegen_flags: <defaults>
</compile_context>

<pallas_src>
import jax
import jax.numpy as jnp
from jax.experimental import pallas as pl
from jax.experimental.pallas import tpu as pltpu

_BUF_SHAPE = (10, 3)


def _buffer_update_kernel(count_ref, buf_ref, upd_ref, out_ref):
    """out = buf + count * update.

    count_ref: (1,) f32 scalar in SMEM (scalar slot, fully hidden).
    buf_ref / upd_ref / out_ref: full (10,3) f32 arrays in VMEM.
    One broadcast multiply-add on the VPU; masked partial-tile store is a
    one-shot ~2-vreg cost, irrelevant next to dispatch latency.
    """
    out_ref[...] = buf_ref[...] + count_ref[0] * upd_ref[...]


@jax.jit
def _fused_update(count_f32, buf, upd):
    """Single cached executable for all count values (count is runtime data)."""
    return pl.pallas_call(
        _buffer_update_kernel,
        out_shape=jax.ShapeDtypeStruct(_BUF_SHAPE, jnp.float32),
        in_specs=[
            pl.BlockSpec(memory_space=pltpu.MemorySpace.SMEM),  # count (1,)
            pl.BlockSpec(memory_space=pltpu.MemorySpace.VMEM),  # buf (10,3)
            pl.BlockSpec(memory_space=pltpu.MemorySpace.VMEM),  # update (10,3)
        ],
        out_specs=pl.BlockSpec(memory_space=pltpu.MemorySpace.VMEM),
    )(count_f32, buf, upd)


def buffer_python_loop_forward(count, buf, update_tensor):
    """JAX wrapper mirroring BufferPythonLoopModel.forward.

    Args:
      count: Python int (as required by `range(count)` in the module).
      buf: (10, 3) f32 buffer state.
      update_tensor: (10, 3) f32 update.
    Returns:
      new buf value, shape (10, 3) f32.
    """
    n = max(int(count), 0)  # range(count) semantics: negative -> 0 iterations
    buf = jnp.asarray(buf, dtype=jnp.float32)
    upd = jnp.asarray(update_tensor, dtype=jnp.float32)

    # Fast paths (review item): skip dispatch entirely for 0, drop the
    # pointless multiply-by-1.0 for 1 (also bit-exact with one loop step).
    if n == 0:
        return buf
    if n == 1:
        return buf + upd

    count_f32 = jnp.full((1,), float(n), dtype=jnp.float32)
    return _fused_update(count_f32, buf, upd)


if __name__ == "__main__":
    key = jax.random.PRNGKey(0)

    # Registered buffer is deterministically zero-initialized, like the module.
    buf = jnp.zeros(_BUF_SHAPE, dtype=jnp.float32)

    # Deterministic small inputs consistent with the module's (10,3) buffer.
    count = 5
    update_tensor = jax.random.normal(key, _BUF_SHAPE, dtype=jnp.float32)

    out = jax.block_until_ready(buffer_python_loop_forward(count, buf, update_tensor))

    # Reference: buf_init + count * update_tensor
    ref = buf + count * update_tensor
    assert out.shape == _BUF_SHAPE and out.dtype == jnp.float32
    assert jnp.allclose(out, ref, atol=1e-6, rtol=1e-6)

    # Edge cases: range(0) -> unchanged; count=1 -> single accumulation.
    out0 = jax.block_until_ready(buffer_python_loop_forward(0, buf, update_tensor))
    assert jnp.allclose(out0, buf, atol=0.0, rtol=0.0)
    out1 = jax.block_until_ready(buffer_python_loop_forward(1, buf, update_tensor))
    assert jnp.allclose(out1, buf + update_tensor, atol=1e-6, rtol=1e-6)

    # Different count reuses the same cached executable (no retrace on count).
    out7 = jax.block_until_ready(buffer_python_loop_forward(7, buf, update_tensor))
    assert jnp.allclose(out7, buf + 7 * update_tensor, atol=1e-6, rtol=1e-6)

    print("KERNEL_OK")
</pallas_src>

<mosaic_0001>
module attributes {stable_mosaic.version = 11 : i64} {
  func.func @_buffer_update_kernel(%arg0: memref<1xf32, #tpu.memory_space<smem>>, %arg1: memref<10x3xf32, #tpu.memory_space<vmem>>, %arg2: memref<10x3xf32, #tpu.memory_space<vmem>>, %arg3: memref<10x3xf32, #tpu.memory_space<vmem>>) attributes {dimension_semantics = [], scalar_prefetch = 0 : i64, scratch_operands = 0 : i64, tpu.core_type = #tpu.core_type<tc>} {
    %c0 = arith.constant 0 : index
    %c0_0 = arith.constant 0 : index
    %0 = vector.load %arg1[%c0, %c0_0] : memref<10x3xf32, #tpu.memory_space<vmem>>, vector<10x3xf32>
    %c0_1 = arith.constant 0 : index
    %1 = memref.load %arg0[%c0_1] : memref<1xf32, #tpu.memory_space<smem>>
    %c0_2 = arith.constant 0 : index
    %c0_3 = arith.constant 0 : index
    %2 = vector.load %arg2[%c0_2, %c0_3] : memref<10x3xf32, #tpu.memory_space<vmem>>, vector<10x3xf32>
    %3 = vector.broadcast %1 : f32 to vector<10x3xf32>
    %4 = arith.mulf %3, %2 : vector<10x3xf32>
    %5 = arith.addf %0, %4 : vector<10x3xf32>
    %c0_4 = arith.constant 0 : index
    %c0_5 = arith.constant 0 : index
    %6 = vector.load %arg3[%c0_4, %c0_5] : memref<10x3xf32, #tpu.memory_space<vmem>>, vector<10x3xf32>
    tpu.vector_store %arg3[%c0_4, %c0_5], %5 {strides = array<i32>} : memref<10x3xf32, #tpu.memory_space<vmem>>, vector<10x3xf32>,
    return
  }
}

</mosaic_0001>

<llo_original>
// kernel: _fused_update.1
$region0: #{_fused_update.1}
  #allocation0 [shape = 'u32[]', space=smem, size = 0x4, offset = 0x4, fixed_abs, tag = 'smem constant byte address 0x4 - core index']
  #allocation1 [shape = 'u32[144,128]{1,0:T(1,128)}', space=vmem, size = 0x12000, scoped, tag = 'internal scratch']
  #allocation2 [shape = 'f32[1]{0:T(128)S(6)}', space=smem, size = 0x200, scoped, tag = 'scoped memory for _fused_update.1']
  %s0 = inlined_call_operand.<no memory space> [shape: f32[1], index: 0, kind: input, shape index: {}]
  %s1 = inlined_call_operand.vmem [shape: f32[10,3], index: 1, kind: input, shape index: {}]
  %s2 = inlined_call_operand.vmem [shape: f32[10,3], index: 2, kind: input, shape index: {}]
  %s3 = inlined_call_operand.vmem [shape: f32[10,3], index: 3, kind: output, shape index: {}]
  %s4 = sld [smem:[#allocation0]]
  $region22: #{_fused_update.1} parent=0
    _
  %s6 = ssub.s32 1, %s4
  %s7 = scalar_select 0, %s6, %s4
  %8 = sst [smem:[#allocation2]] %s0
  // Predicated region
  $region2: #{_fused_update.1} parent=0 // pred_check
    _
  $region3: #{_fused_update.1} parent=0 // pred_check_branch
    %10 = sbr.rel (0) target = $region5
  $region4: #{_fused_update.1} parent=0 // pred_region
    _
  $region5: #{_fused_update.1} parent=0 // pred_fallthru
    _
  // Predicated region
  $region6: #{_fused_update.1} parent=0 // pred_check
    _
  $region7: #{_fused_update.1} parent=0 // pred_check_branch
    %12 = sbr.rel (0) target = $region9
  $region8: #{_fused_update.1} parent=0 // pred_region
    _
  $region9: #{_fused_update.1} parent=0 // pred_fallthru
    _
  // Predicated region
  $region10: #{_fused_update.1} parent=0 // pred_check
    _
  $region11: #{_fused_update.1} parent=0 // pred_check_branch
    %14 = sbr.rel (0) target = $region13
  $region12: #{_fused_update.1} parent=0 // pred_region
    _
  $region13: #{_fused_update.1} parent=0 // pred_fallthru
    _
  %v15 = vld [vmem:[%s1] sm:$0xff]
  %v16 = vld [vmem:[%s1 + $0x8] sm:$0x3]
  %s17 = sld [smem:[#allocation2]]
  %v18 = vld [vmem:[%s2] sm:$0xff]
  %v19 = vld [vmem:[%s2 + $0x8] sm:$0x3]
  %v20 = vstv %s17
  %v21 = vmul.f32 %v20, %v18
  %v22 = vmul.f32 %v20, %v19
  %v23 = vadd.f32 %v15, %v21
  %v24 = vadd.f32 %v16, %v22
  %vm25 = vcmask 23552
  %26 = vst.msk [vmem:[%s3] sm:$0xff] %vm25, %v23
  %vm27 = vcmask 17408
  %28 = vst.msk [vmem:[%s3 + $0x8] sm:$0x3] %vm27, %v24
  // Predicated region
  $region14: #{_fused_update.1} parent=0 // pred_check
    _
  $region15: #{_fused_update.1} parent=0 // pred_check_branch
    %30 = sbr.rel (0) target = $region17
  $region16: #{_fused_update.1} parent=0 // pred_region
    _
  $region17: #{_fused_update.1} parent=0 // pred_fallthru
    _
  // Predicated region
  $region18: #{_fused_update.1} parent=0 // pred_check
    _
  $region19: #{_fused_update.1} parent=0 // pred_check_branch
    %32 = sbr.rel (0) target = $region21
  $region20: #{_fused_update.1} parent=0 // pred_region
    _
  $region21: #{_fused_update.1} parent=0 // pred_fallthru
    _

</llo_original>
